<compile_context>
chip_gen: v7x
topology: tpu7x:2x2x1
jax: 0.10.0
libtpu: 0.0.40
codegen_flags: <defaults>
</compile_context>

<pallas_src>
import functools

import jax
import jax.numpy as jnp
from jax.experimental import pallas as pl
from jax.experimental.pallas import tpu as pltpu


# ----------------------------- Pallas kernels ------------------------------ #

def _fused_mlp_kernel(x_ref, w1_ref, b1_ref, w2_ref, b2_ref, o_ref, *,
                      compute_dtype):
    """out = silu(x @ W1 + b1) @ W2 + b2 for one (TM, Din) batch tile.

    grid = (M tiles,).  W1/W2/biases have constant index maps (resident); the
    intermediate activation lives only in vregs/VMEM.
    """
    x = x_ref[...].astype(compute_dtype)              # cast in-kernel (VPU)
    h = jnp.dot(x, w1_ref[...], preferred_element_type=jnp.float32)
    h = h + b1_ref[...]                                # (TM, Dp) f32
    h = h * jax.nn.sigmoid(h)                          # SiLU (EUP exp/recip)
    out = jnp.dot(h.astype(compute_dtype), w2_ref[...],
                  preferred_element_type=jnp.float32)
    o_ref[...] = (out + b2_ref[...]).astype(o_ref.dtype)


def _kacc_mlp_kernel(x_ref, w1_ref, b1_ref, w2_ref, b2_ref, o_ref, acc_ref, *,
                     compute_dtype):
    """Fallback for very large Din: grid = (M tiles, K tiles), f32 accumulator."""
    k = pl.program_id(1)

    @pl.when(k == 0)
    def _():
        acc_ref[...] = jnp.zeros_like(acc_ref)

    acc_ref[...] += jnp.dot(x_ref[...].astype(compute_dtype), w1_ref[...],
                            preferred_element_type=jnp.float32)

    @pl.when(k == pl.num_programs(1) - 1)
    def _():
        h = acc_ref[...] + b1_ref[...]
        h = h * jax.nn.sigmoid(h)
        out = jnp.dot(h.astype(compute_dtype), w2_ref[...],
                      preferred_element_type=jnp.float32)
        o_ref[...] = (out + b2_ref[...]).astype(o_ref.dtype)


# ------------------------------ Wrapper ------------------------------------ #

def _round_up(x, m):
    return ((x + m - 1) // m) * m


_VMEM_LIMIT = 48 * 1024 * 1024       # below v7x's 64 MiB physical
_FUSED_BUDGET = 40 * 1024 * 1024     # headroom for choosing the fused path


def tabular_embedding(params, x, *, block_m=512, block_k=512,
                      compute_dtype=jnp.bfloat16, out_dtype=None,
                      force_k_reduction=False):
    """Forward pass equivalent to TabularEmbedding.forward.  x: (B, input_dim)."""
    w1, b1, w2, b2 = params["w1"], params["b1"], params["w2"], params["b2"]
    B, Din = x.shape
    D = w1.shape[1]
    out_dtype = x.dtype if out_dtype is None else out_dtype

    # --- batch tile geometry (>= 2 M tiles when possible, for v7x megacore) -- #
    TM = _round_up(min(block_m, _round_up(B, 8)), 8)
    if B > 8 and _round_up(B, TM) // TM < 2:
        TM = _round_up(max(8, TM // 2), 8)
    Bp = _round_up(B, TM)

    Dp = _round_up(D, 128)                              # lane-dense N

    cd_bytes = jnp.dtype(compute_dtype).itemsize
    x_bytes = jnp.dtype(x.dtype).itemsize

    # Zero-padded batch tail only (no K pad, no wrapper cast of x).
    xp = x if Bp == B else jnp.pad(x, ((0, Bp - B), (0, 0)))
    b1p = jnp.pad(b1, (0, Dp - D)).reshape(1, Dp).astype(jnp.float32)
    b2p = jnp.pad(b2, (0, Dp - D)).reshape(1, Dp).astype(jnp.float32)
    w2p = jnp.pad(w2, ((0, Dp - D), (0, Dp - D))).astype(compute_dtype)

    # VMEM estimate for the fused (no K grid) path.
    fused_vmem = (2 * TM * Din * x_bytes          # x tile, double-buffered
                  + 2 * Din * Dp * cd_bytes       # W1
                  + 2 * Dp * Dp * cd_bytes        # W2
                  + 4 * Dp * 4                    # biases
                  + 2 * TM * Dp * 4)              # output tile (f32 worst case)
    use_fused = (not force_k_reduction) and fused_vmem <= _FUSED_BUDGET

    if use_fused:
        w1p = jnp.pad(w1, ((0, 0), (0, Dp - D))).astype(compute_dtype)
        kernel = functools.partial(_fused_mlp_kernel, compute_dtype=compute_dtype)
        out = pl.pallas_call(
            kernel,
            out_shape=jax.ShapeDtypeStruct((Bp, Dp), out_dtype),
            grid_spec=pltpu.PrefetchScalarGridSpec(
                num_scalar_prefetch=0,
                grid=(Bp // TM,),
                in_specs=[
                    pl.BlockSpec((TM, Din), lambda i: (i, 0)),   # x tile (K = full dim)
                    pl.BlockSpec((Din, Dp), lambda i: (0, 0)),   # W1 resident
                    pl.BlockSpec((1, Dp), lambda i: (0, 0)),     # b1 resident
                    pl.BlockSpec((Dp, Dp), lambda i: (0, 0)),    # W2 resident
                    pl.BlockSpec((1, Dp), lambda i: (0, 0)),     # b2 resident
                ],
                out_specs=pl.BlockSpec((TM, Dp), lambda i: (i, 0)),
                scratch_shapes=[],
            ),
            compiler_params=pltpu.CompilerParams(
                dimension_semantics=("parallel",),
                vmem_limit_bytes=_VMEM_LIMIT,
            ),
        )(xp, w1p, b1p, w2p, b2p)
    else:
        # Fallback: K-reduction grid for very large Din.
        TK = _round_up(min(block_k, _round_up(Din, 128)), 128)
        Kp = _round_up(Din, TK)
        xp = jnp.pad(xp, ((0, 0), (0, Kp - Din)))
        w1p = jnp.pad(w1, ((0, Kp - Din), (0, Dp - D))).astype(compute_dtype)
        kernel = functools.partial(_kacc_mlp_kernel, compute_dtype=compute_dtype)
        out = pl.pallas_call(
            kernel,
            out_shape=jax.ShapeDtypeStruct((Bp, Dp), out_dtype),
            grid_spec=pltpu.PrefetchScalarGridSpec(
                num_scalar_prefetch=0,
                grid=(Bp // TM, Kp // TK),
                in_specs=[
                    pl.BlockSpec((TM, TK), lambda i, k: (i, k)),
                    pl.BlockSpec((TK, Dp), lambda i, k: (k, 0)),
                    pl.BlockSpec((1, Dp), lambda i, k: (0, 0)),
                    pl.BlockSpec((Dp, Dp), lambda i, k: (0, 0)),
                    pl.BlockSpec((1, Dp), lambda i, k: (0, 0)),
                ],
                out_specs=pl.BlockSpec((TM, Dp), lambda i, k: (i, 0)),
                scratch_shapes=[pltpu.VMEM((TM, Dp), jnp.float32)],
            ),
            compiler_params=pltpu.CompilerParams(
                dimension_semantics=("parallel", "arbitrary"),
                vmem_limit_bytes=_VMEM_LIMIT,
            ),
        )(xp, w1p, b1p, w2p, b2p)

    return out[:B, :D]


# ------------------------------ Params / reference -------------------------- #

def init_params(key, input_dim, out_dim):
    k1, k2, k3, k4 = jax.random.split(key, 4)
    lim1 = 1.0 / float(input_dim) ** 0.5
    lim2 = 1.0 / float(out_dim) ** 0.5
    return {
        "w1": jax.random.uniform(k1, (input_dim, out_dim), jnp.float32, -lim1, lim1),
        "b1": jax.random.uniform(k2, (out_dim,), jnp.float32, -lim1, lim1),
        "w2": jax.random.uniform(k3, (out_dim, out_dim), jnp.float32, -lim2, lim2),
        "b2": jax.random.uniform(k4, (out_dim,), jnp.float32, -lim2, lim2),
    }


def _reference_forward(params, x):
    h = x @ params["w1"] + params["b1"]
    h = h * jax.nn.sigmoid(h)          # SiLU
    return h @ params["w2"] + params["b2"]


# ------------------------------ Main ---------------------------------------- #

if __name__ == "__main__":
    key = jax.random.PRNGKey(0)
    kp, kx, kp2, kx2, kp3, kx3 = jax.random.split(key, 6)

    # Test 1: small module-consistent shapes, f32 compute, fused path,
    # >= 2 M tiles (exercises the megacore heuristic).
    B, Din, D = 16, 16, 32
    params = init_params(kp, Din, D)
    x = jax.random.normal(kx, (B, Din), jnp.float32)
    fwd = jax.jit(functools.partial(tabular_embedding, compute_dtype=jnp.float32))
    emb = jax.block_until_ready(fwd(params, x))
    assert emb.shape == (B, D), emb.shape
    ref = _reference_forward(params, x)
    assert jnp.allclose(emb, ref, rtol=1e-3, atol=1e-3), "f32 fused mismatch"

    # Test 2: ragged dims, default bf16 operands (f32 accumulation), fused path.
    B2, Din2, D2 = 64, 300, 96
    params2 = init_params(kp2, Din2, D2)
    x2 = jax.random.normal(kx2, (B2, Din2), jnp.float32)
    fwd2 = jax.jit(functools.partial(tabular_embedding, block_m=32))
    emb2 = jax.block_until_ready(fwd2(params2, x2))
    assert emb2.shape == (B2, D2), emb2.shape
    ref2 = _reference_forward(params2, x2)
    assert jnp.allclose(emb2, ref2, rtol=2e-2, atol=2e-2), "bf16 fused mismatch"

    # Test 3: force the K-reduction fallback path (multi-step K grid).
    B3, Din3, D3 = 64, 384, 64
    params3 = init_params(kp3, Din3, D3)
    x3 = jax.random.normal(kx3, (B3, Din3), jnp.float32)
    fwd3 = jax.jit(functools.partial(tabular_embedding, block_m=32, block_k=128,
                                     compute_dtype=jnp.float32,
                                     force_k_reduction=True))
    emb3 = jax.block_until_ready(fwd3(params3, x3))
    assert emb3.shape == (B3, D3), emb3.shape
    ref3 = _reference_forward(params3, x3)
    assert jnp.allclose(emb3, ref3, rtol=1e-3, atol=1e-3), "f32 K-grid mismatch"

    print("KERNEL_OK")
</pallas_src>

<mosaic_0001>
module attributes {stable_mosaic.version = 11 : i64} {
  func.func @_fused_mlp_kernel(%arg0: i32, %arg1: memref<8x16xf32, #tpu.memory_space<vmem>>, %arg2: memref<16x128xf32, #tpu.memory_space<vmem>>, %arg3: memref<1x128xf32, #tpu.memory_space<vmem>>, %arg4: memref<128x128xf32, #tpu.memory_space<vmem>>, %arg5: memref<1x128xf32, #tpu.memory_space<vmem>>, %arg6: memref<8x128xf32, #tpu.memory_space<vmem>>) attributes {dimension_semantics = [#tpu.dimension_semantics<parallel>], iteration_bounds = array<i64: 2>, scalar_prefetch = 0 : i64, scratch_operands = 0 : i64, tpu.core_type = #tpu.core_type<tc>, window_params = [{transform_indices = @transform_0, window_bounds = array<i64: 8, 16>}, {pipeline_mode = #tpu.pipeline_mode<synchronous>, transform_indices = @transform_1, window_bounds = array<i64: 16, 128>}, {pipeline_mode = #tpu.pipeline_mode<synchronous>, transform_indices = @transform_2, window_bounds = array<i64: 1, 128>}, {pipeline_mode = #tpu.pipeline_mode<synchronous>, transform_indices = @transform_3, window_bounds = array<i64: 128, 128>}, {pipeline_mode = #tpu.pipeline_mode<synchronous>, transform_indices = @transform_4, window_bounds = array<i64: 1, 128>}, {transform_indices = @transform_5, window_bounds = array<i64: 8, 128>}]} {
    %c0 = arith.constant 0 : index
    %c0_0 = arith.constant 0 : index
    %0 = vector.load %arg1[%c0, %c0_0] : memref<8x16xf32, #tpu.memory_space<vmem>>, vector<8x16xf32>
    %c0_1 = arith.constant 0 : index
    %c0_2 = arith.constant 0 : index
    %1 = vector.load %arg2[%c0_1, %c0_2] : memref<16x128xf32, #tpu.memory_space<vmem>>, vector<16x128xf32>
    %cst = arith.constant dense<0.000000e+00> : vector<8x128xf32>
    %2 = tpu.matmul %0, %1, %cst {dimension_numbers = #tpu.dot_dimension_numbers<[1], [0], [0], [1], [0, 0, 1, 1], [], []>} : vector<8x16xf32>, vector<16x128xf32>, vector<8x128xf32> -> vector<8x128xf32>
    %c0_3 = arith.constant 0 : index
    %c0_4 = arith.constant 0 : index
    %3 = vector.load %arg3[%c0_3, %c0_4] : memref<1x128xf32, #tpu.memory_space<vmem>>, vector<1x128xf32>
    %4 = vector.broadcast %3 : vector<1x128xf32> to vector<8x128xf32>
    %5 = arith.addf %2, %4 : vector<8x128xf32>
    %6 = arith.negf %5 : vector<8x128xf32>
    %7 = math.exp %6 : vector<8x128xf32>
    %cst_5 = arith.constant 1.000000e+00 : f32
    %8 = vector.broadcast %cst_5 : f32 to vector<8x128xf32>
    %9 = arith.addf %8, %7 : vector<8x128xf32>
    %10 = arith.divf %8, %9 : vector<8x128xf32>
    %11 = arith.mulf %5, %10 : vector<8x128xf32>
    %c0_6 = arith.constant 0 : index
    %c0_7 = arith.constant 0 : index
    %12 = vector.load %arg4[%c0_6, %c0_7] : memref<128x128xf32, #tpu.memory_space<vmem>>, vector<128x128xf32>
    %cst_8 = arith.constant dense<0.000000e+00> : vector<8x128xf32>
    %13 = tpu.matmul %11, %12, %cst_8 {dimension_numbers = #tpu.dot_dimension_numbers<[1], [0], [0], [1], [0, 0, 1, 1], [], []>} : vector<8x128xf32>, vector<128x128xf32>, vector<8x128xf32> -> vector<8x128xf32>
    %c0_9 = arith.constant 0 : index
    %c0_10 = arith.constant 0 : index
    %14 = vector.load %arg5[%c0_9, %c0_10] : memref<1x128xf32, #tpu.memory_space<vmem>>, vector<1x128xf32>
    %15 = vector.broadcast %14 : vector<1x128xf32> to vector<8x128xf32>
    %16 = arith.addf %13, %15 : vector<8x128xf32>
    %c0_11 = arith.constant 0 : index
    %c0_12 = arith.constant 0 : index
    %17 = vector.load %arg6[%c0_11, %c0_12] : memref<8x128xf32, #tpu.memory_space<vmem>>, vector<8x128xf32>
    tpu.vector_store %arg6[%c0_11, %c0_12], %16 {strides = array<i32>} : memref<8x128xf32, #tpu.memory_space<vmem>>, vector<8x128xf32>,
    return
  }
  func.func @transform_0(%arg0: i32) -> (i32, i32) {
    %c0_i32 = arith.constant 0 : i32
    %c0_i32_0 = arith.constant 0 : i32
    return %arg0, %c0_i32 : i32, i32
  }
  func.func @transform_1(%arg0: i32) -> (i32, i32) {
    %c0_i32 = arith.constant 0 : i32
    %c0_i32_0 = arith.constant 0 : i32
    %c0_i32_1 = arith.constant 0 : i32
    return %c0_i32, %c0_i32_0 : i32, i32
  }
  func.func @transform_2(%arg0: i32) -> (i32, i32) {
    %c0_i32 = arith.constant 0 : i32
    %c0_i32_0 = arith.constant 0 : i32
    %c0_i32_1 = arith.constant 0 : i32
    return %c0_i32, %c0_i32_0 : i32, i32
  }
  func.func @transform_3(%arg0: i32) -> (i32, i32) {
    %c0_i32 = arith.constant 0 : i32
    %c0_i32_0 = arith.constant 0 : i32
    %c0_i32_1 = arith.constant 0 : i32
    return %c0_i32, %c0_i32_0 : i32, i32
  }
  func.func @transform_4(%arg0: i32) -> (i32, i32) {
    %c0_i32 = arith.constant 0 : i32
    %c0_i32_0 = arith.constant 0 : i32
    %c0_i32_1 = arith.constant 0 : i32
    return %c0_i32, %c0_i32_0 : i32, i32
  }
  func.func @transform_5(%arg0: i32) -> (i32, i32) {
    %c0_i32 = arith.constant 0 : i32
    %c0_i32_0 = arith.constant 0 : i32
    return %arg0, %c0_i32 : i32, i32
  }
}

</mosaic_0001>

<llo_original>
// kernel: tabular_embedding.1
$region0: #{tabular_embedding.1}
  #allocation0 [shape = 'u32[]', space=smem, size = 0x4, offset = 0x4, fixed_abs, tag = 'smem constant byte address 0x4 - core index']
  #allocation1 [shape = 'u32[144,128]{1,0:T(1,128)}', space=vmem, size = 0x12000, scoped, tag = 'internal scratch']
  %s0 = inlined_call_operand.vmem [shape: f32[16,16], index: 0, kind: input, shape index: {}]
  %s1 = inlined_call_operand.vmem [shape: f32[16,128], index: 1, kind: input, shape index: {}]
  %s2 = inlined_call_operand.vmem [shape: f32[1,128], index: 2, kind: input, shape index: {}]
  %s3 = inlined_call_operand.vmem [shape: f32[128,128], index: 3, kind: input, shape index: {}]
  %s4 = inlined_call_operand.vmem [shape: f32[1,128], index: 4, kind: input, shape index: {}]
  %s5 = inlined_call_operand.hbm [shape: f32[16,128], index: 5, kind: output, shape index: {}]
  %s6 = sld [smem:[#allocation0]]
  $region53: #{tabular_embedding.1} parent=0
    _
  %s8 = ssub.s32 1, %s6
  %s9 = scalar_select 0, %s8, %s6
  $region1: #{tabular_embedding.1} parent=0
    #allocation2 [shape = 'u8[8192]{0}', space=vmem, size = 0x2000, scoped, tag = 'output window, operand 0']
    #allocation3 [shape = 's32[2]{0}', space=sflag, size = 0x8, scoped, tag = 'scoped memory for tabular_embedding.1']
    %10 = vsyncpa [#allocation3], 0
    %s11 = scalar_lea.sflag [#allocation3], 1
    %12 = vsyncpa %s11, 0
    loop: start=0, step=1, limit=4
    $region2: #{tabular_embedding.1} parent=1 // loop_pre_header
      _
    $region3: #{tabular_embedding.1} parent=1 // loop_header
      %s14 = sphi 0, %s18
      %p15 = scmp.ge.s32.totalorder %s14, 4
      %s24 = sphi 0, %s26
      %s27 = sphi 0, %s24
      %s28 = sphi 0, %s27
      %s44 = sphi 0, %s28
      %s48 = sphi 0, %s48
      %s50 = sphi 0, %s48
      %s51 = sphi 0, %s50
      %s65 = sphi 0, %s51
      %s69 = sphi 0, %s69
      %s71 = sphi 0, %s69
      %s72 = sphi 0, %s71
      %s86 = sphi 0, %s72
      %s90 = sphi 0, %s90
      %s92 = sphi 0, %s90
      %s93 = sphi 0, %s92
      %s107 = sphi 0, %s93
      %s111 = sphi 0, %s111
      %s113 = sphi 0, %s111
      %s114 = sphi 0, %s113
      %s128 = sphi 0, %s114
      %s134 = sphi 0, %s136
      %s137 = sphi 0, %s134
      %s138 = sphi 0, %s137
      %s154 = sphi 0, %s138
    $region4: #{tabular_embedding.1} parent=1 // loop_header_branch
      %17 = sbr.rel (%p15) target = $region8
    $region5: #{tabular_embedding.1} parent=1 // loop_body
      %s19 = ssub.s32 %s14, 1
      %s20 = ssub.s32 %s14, 2
      %s21 = sadd.s32 %s14, 1
      %s22 = ssub.s32 %s14, %s21
      %p23 = scmp.eq.s32.totalorder %s22, 0
      %s25 = sadd.s32 %s24, 1
      %s26 = scalar_select %p23, %s24, %s25
      %p29 = pneg %p23
      %p30 = scmp.eq.s32.totalorder %s14, 1
      %p31 = por %p29, %p30
      %p32 = scmp.ne.s32.totalorder %s24, %s27
      %p33 = scmp.eq.s32.totalorder %s14, 0
      %p34 = por %p32, %p33
      %p35 = scmp.ne.s32.totalorder %s24, %s27
      %p36 = scmp.eq.s32.totalorder %s19, 1
      %p37 = por %p35, %p36
      %p38 = scmp.ne.s32.totalorder %s27, %s28
      %p39 = scmp.eq.s32.totalorder %s19, 0
      %p40 = por %p38, %p39
      %p41 = scmp.ne.s32.totalorder %s27, %s28
      %p42 = scmp.eq.s32.totalorder %s20, 1
      %p43 = por %p41, %p42
      %p45 = scmp.ne.s32.totalorder %s28, %s44
      %p46 = scmp.eq.s32.totalorder %s20, 0
      %p47 = por %p45, %p46
      %s49 = sadd.s32 %s48, 1
      %p52 = scmp.eq.s32.totalorder %s14, 1
      %p53 = scmp.ne.s32.totalorder %s48, %s50
      %p54 = scmp.eq.s32.totalorder %s14, 0
      %p55 = por %p53, %p54
      %p56 = scmp.ne.s32.totalorder %s48, %s50
      %p57 = scmp.eq.s32.totalorder %s19, 1
      %p58 = por %p56, %p57
      %p59 = scmp.ne.s32.totalorder %s50, %s51
      %p60 = scmp.eq.s32.totalorder %s19, 0
      %p61 = por %p59, %p60
      %p62 = scmp.ne.s32.totalorder %s50, %s51
      %p63 = scmp.eq.s32.totalorder %s20, 1
      %p64 = por %p62, %p63
      %p66 = scmp.ne.s32.totalorder %s51, %s65
      %p67 = scmp.eq.s32.totalorder %s20, 0
      %p68 = por %p66, %p67
      %s70 = sadd.s32 %s69, 1
      %p73 = scmp.eq.s32.totalorder %s14, 1
      %p74 = scmp.ne.s32.totalorder %s69, %s71
      %p75 = scmp.eq.s32.totalorder %s14, 0
      %p76 = por %p74, %p75
      %p77 = scmp.ne.s32.totalorder %s69, %s71
      %p78 = scmp.eq.s32.totalorder %s19, 1
      %p79 = por %p77, %p78
      %p80 = scmp.ne.s32.totalorder %s71, %s72
      %p81 = scmp.eq.s32.totalorder %s19, 0
      %p82 = por %p80, %p81
      %p83 = scmp.ne.s32.totalorder %s71, %s72
      %p84 = scmp.eq.s32.totalorder %s20, 1
      %p85 = por %p83, %p84
      %p87 = scmp.ne.s32.totalorder %s72, %s86
      %p88 = scmp.eq.s32.totalorder %s20, 0
      %p89 = por %p87, %p88
      %s91 = sadd.s32 %s90, 1
      %p94 = scmp.eq.s32.totalorder %s14, 1
      %p95 = scmp.ne.s32.totalorder %s90, %s92
      %p96 = scmp.eq.s32.totalorder %s14, 0
      %p97 = por %p95, %p96
      %p98 = scmp.ne.s32.totalorder %s90, %s92
      %p99 = scmp.eq.s32.totalorder %s19, 1
      %p100 = por %p98, %p99
      %p101 = scmp.ne.s32.totalorder %s92, %s93
      %p102 = scmp.eq.s32.totalorder %s19, 0
      %p103 = por %p101, %p102
      %p104 = scmp.ne.s32.totalorder %s92, %s93
      %p105 = scmp.eq.s32.totalorder %s20, 1
      %p106 = por %p104, %p105
      %p108 = scmp.ne.s32.totalorder %s93, %s107
      %p109 = scmp.eq.s32.totalorder %s20, 0
      %p110 = por %p108, %p109
      %s112 = sadd.s32 %s111, 1
      %p115 = scmp.eq.s32.totalorder %s14, 1
      %p116 = scmp.ne.s32.totalorder %s111, %s113
      %p117 = scmp.eq.s32.totalorder %s14, 0
      %p118 = por %p116, %p117
      %p119 = scmp.ne.s32.totalorder %s111, %s113
      %p120 = scmp.eq.s32.totalorder %s19, 1
      %p121 = por %p119, %p120
      %p122 = scmp.ne.s32.totalorder %s113, %s114
      %p123 = scmp.eq.s32.totalorder %s19, 0
      %p124 = por %p122, %p123
      %p125 = scmp.ne.s32.totalorder %s113, %s114
      %p126 = scmp.eq.s32.totalorder %s20, 1
      %p127 = por %p125, %p126
      %p129 = scmp.ne.s32.totalorder %s114, %s128
      %p130 = scmp.eq.s32.totalorder %s20, 0
      %p131 = por %p129, %p130
      %s132 = ssub.s32 %s14, %s21
      %p133 = scmp.eq.s32.totalorder %s132, 0
      %s135 = sadd.s32 %s134, 1
      %s136 = scalar_select %p133, %s134, %s135
      %p139 = pneg %p133
      %p140 = scmp.eq.s32.totalorder %s14, 1
      %p141 = por %p139, %p140
      %p142 = scmp.ne.s32.totalorder %s134, %s137
      %p143 = scmp.eq.s32.totalorder %s14, 0
      %p144 = por %p142, %p143
      %p145 = scmp.ne.s32.totalorder %s134, %s137
      %p146 = scmp.eq.s32.totalorder %s19, 1
      %p147 = por %p145, %p146
      %p148 = scmp.ne.s32.totalorder %s137, %s138
      %p149 = scmp.eq.s32.totalorder %s19, 0
      %p150 = por %p148, %p149
      %p151 = scmp.ne.s32.totalorder %s137, %s138
      %p152 = scmp.eq.s32.totalorder %s20, 1
      %p153 = por %p151, %p152
      %p155 = scmp.ne.s32.totalorder %s138, %s154
      %p156 = scmp.eq.s32.totalorder %s20, 0
      %p157 = por %p155, %p156
      %p158 = scmp.le.s32.totalorder 1, %s14
      %p159 = scmp.lt.s32.totalorder %s14, 3
      %p160 = pnand %p158, %p159
      %p161 = pneg %p160
      // Predicated region
      $region9: #{tabular_embedding.1} parent=5 // pred_check
        _
      $region10: #{tabular_embedding.1} parent=5 // pred_check_branch
        %163 = sbr.rel (%p160) target = $region12
      $region11: #{tabular_embedding.1} parent=5 // pred_region
        %s164 = ssub.s32 %s14, 1
        // Predicated region
        $region13: #{tabular_embedding.1} parent=11 // pred_check
          %p165 = pneg %p61
        $region14: #{tabular_embedding.1} parent=11 // pred_check_branch
          %167 = sbr.rel (%p165) target = $region16
        $region15: #{tabular_embedding.1} parent=11 // pred_region
          _
        $region16: #{tabular_embedding.1} parent=11 // pred_fallthru
          _
        // Predicated region
        $region17: #{tabular_embedding.1} parent=11 // pred_check
          %p168 = pneg %p82
        $region18: #{tabular_embedding.1} parent=11 // pred_check_branch
          %170 = sbr.rel (%p168) target = $region20
        $region19: #{tabular_embedding.1} parent=11 // pred_region
          _
        $region20: #{tabular_embedding.1} parent=11 // pred_fallthru
          _
        // Predicated region
        $region21: #{tabular_embedding.1} parent=11 // pred_check
          %p171 = pneg %p103
        $region22: #{tabular_embedding.1} parent=11 // pred_check_branch
          %173 = sbr.rel (%p171) target = $region24
        $region23: #{tabular_embedding.1} parent=11 // pred_region
          _
        $region24: #{tabular_embedding.1} parent=11 // pred_fallthru
          _
        // Predicated region
        $region25: #{tabular_embedding.1} parent=11 // pred_check
          %p174 = pneg %p124
        $region26: #{tabular_embedding.1} parent=11 // pred_check_branch
          %176 = sbr.rel (%p174) target = $region28
        $region27: #{tabular_embedding.1} parent=11 // pred_region
          _
        $region28: #{tabular_embedding.1} parent=11 // pred_fallthru
          _
      $region12: #{tabular_embedding.1} parent=5 // pred_fallthru
        _
      %p177 = scmp.lt.s32.totalorder %s14, 2
      // Predicated region
      $region29: #{tabular_embedding.1} parent=5 // pred_check
        %p178 = pneg %p177
      $region30: #{tabular_embedding.1} parent=5 // pred_check_branch
        %180 = sbr.rel (%p178) target = $region32
      $region31: #{tabular_embedding.1} parent=5 // pred_region
        // Predicated region
        $region33: #{tabular_embedding.1} parent=31 // pred_check
          %p181 = pneg %p34
        $region34: #{tabular_embedding.1} parent=31 // pred_check_branch
          %183 = sbr.rel (%p181) target = $region36
        $region35: #{tabular_embedding.1} parent=31 // pred_region
          %p184 = scmp.lt.s32.totalorder %s14, 1
          %s185 = scalar_select %p184, %s14, 1
          %s186 = smul.addr %s185, 8
          %s187 = scalar_lea.vmem %s0, %s186
        $region36: #{tabular_embedding.1} parent=31 // pred_fallthru
          _
      $region32: #{tabular_embedding.1} parent=5 // pred_fallthru
        _
      %p188 = scmp.le.s32.totalorder 1, %s14
      %p189 = scmp.lt.s32.totalorder %s14, 3
      %p190 = pnand %p188, %p189
      %p191 = pneg %p190
      // Predicated region
      $region37: #{tabular_embedding.1} parent=5 // pred_check
        _
      $region38: #{tabular_embedding.1} parent=5 // pred_check_branch
        %193 = sbr.rel (%p190) target = $region40
      $region39: #{tabular_embedding.1} parent=5 // pred_region
        %s194 = ssub.s32 %s14, 1
        %p195 = scmp.lt.s32.totalorder %s19, 1
        %s196 = scalar_select %p195, %s19, 1
        %s197 = smul.addr %s196, 8
        %s198 = scalar_lea.vmem %s0, %s197
        %p199 = pneg %p40
        %p200 = pneg %p37
        %p201 = pneg %p61
        %p202 = pneg %p58
        %p203 = pneg %p82
        %p204 = pneg %p79
        %p205 = pneg %p103
        %p206 = pneg %p100
        %p207 = pneg %p124
        %p208 = pneg %p121
        %p209 = pneg %p150
        %p210 = pneg %p147
        %s211 = sand.u32 %s137, 1
        %s212 = scalar_lea.sflag [#allocation3], %s211
        %s213 = sand.u32 %s137, 1
        %s214 = smul.addr %s213, 8
        %s215 = scalar_lea.vmem [#allocation2], %s214
        %p216 = scmp.lt.s32.totalorder %s19, 1
        %s217 = scalar_select %p216, %s19, 1
        %s218 = smul.addr %s217, 8
        %s219 = scalar_lea.vmem %s0, %s218
        %v220 = vld [vmem:[%s219] sm:$0xff]
        %v221 = vld [vmem:[%s1] sm:$0xff]
        %v222 = vld [vmem:[%s1 + $0x8] sm:$0xff]
        %v223 = vld [vmem:[%s2] sm:$0x1]
        %v225 = vlaneseq
        %v226 = vshrl.u32 %v225, 7
        %v227 = vsub.s32 0, %v226
        %v228 = vrot.slane %v223, %v227
        %vm230 = vcmask 130048
        %v232 = vsel %vm230, %v220, 0
        %234 = vmatprep.subr.mxu0 0.0
        %235 = vmatpush1.msra.mxu0 %v221
        %236 = vmatprep.subr.mxu0 0.0
        %237 = vmatpush1.msra.mxu0 %v222
        %238 = vmatprep.subr.mxu0 0.0
        %239 = vmatpush1.msra.mxu0 0.0
        %240 = vmatprep.subr.mxu0 0.0
        %241 = vmatpush1.msra.mxu0 0.0
        %242 = vmatprep.subr.mxu0 0.0
        %243 = vmatpush1.msra.mxu0 0.0
        %244 = vmatprep.subr.mxu0 0.0
        %245 = vmatpush1.msra.mxu0 0.0
        %246 = vmatprep.subr.mxu0 0.0
        %247 = vmatpush1.msra.mxu0 0.0
        %248 = vmatprep.subr.mxu0 0.0
        %249 = vmatpush1.msra.mxu0 0.0
        %250 = vmatprep.subr.mxu0 0.0
        %251 = vmatpush1.msra.mxu0 0.0
        %252 = vmatprep.subr.mxu0 0.0
        %253 = vmatpush1.msra.mxu0 0.0
        %254 = vmatprep.subr.mxu0 0.0
        %255 = vmatpush1.msra.mxu0 0.0
        %256 = vmatprep.subr.mxu0 0.0
        %257 = vmatpush1.msra.mxu0 0.0
        %258 = vmatprep.subr.mxu0 0.0
        %259 = vmatpush1.msra.mxu0 0.0
        %260 = vmatprep.subr.mxu0 0.0
        %261 = vmatpush1.msra.mxu0 0.0
        %262 = vmatprep.subr.mxu0 0.0
        %263 = vmatpush1.msra.mxu0 0.0
        %264 = vmatprep.subr.mxu0 0.0
        %265 = vmatpush1.msra.mxu0 0.0
        %266 = vmatprep.subr.mxu0 0.0
        %267 = vmatpush1.msra.mxu0 0.0
        %268 = vmatprep.subr.mxu0 0.0
        %269 = vmatpush1.msra.mxu0 0.0
        %270 = vmatprep.subr.mxu0 0.0
        %271 = vmatpush1.msra.mxu0 0.0
        %272 = vmatprep.subr.mxu0 0.0
        %273 = vmatpush1.msra.mxu0 0.0
        %274 = vmatprep.subr.mxu0 0.0
        %275 = vmatpush1.msra.mxu0 0.0
        %276 = vmatprep.subr.mxu0 0.0
        %277 = vmatpush1.msra.mxu0 0.0
        %278 = vmatprep.subr.mxu0 0.0
        %279 = vmatpush1.msra.mxu0 0.0
        %280 = vmatprep.subr.mxu0 0.0
        %281 = vmatpush1.msra.mxu0 0.0
        %282 = vmatprep.subr.mxu0 0.0
        %283 = vmatpush1.msra.mxu0 0.0
        %284 = vmatprep.subr.mxu0 0.0
        %285 = vmatpush1.msra.mxu0 0.0
        %286 = vmatprep.subr.mxu0 0.0
        %287 = vmatpush1.msra.mxu0 0.0
        %288 = vmatprep.subr.mxu0 0.0
        %289 = vmatpush1.msra.mxu0 0.0
        %290 = vmatprep.subr.mxu0 0.0
        %291 = vmatpush1.msra.mxu0 0.0
        %292 = vmatprep.subr.mxu0 0.0
        %293 = vmatpush1.msra.mxu0 0.0
        %294 = vmatprep.subr.mxu0 0.0
        %295 = vmatpush1.msra.mxu0 0.0
        %296 = vmatprep.subr.mxu0 0.0
        %297 = vmatpush1.msra.mxu0 0.0
        %298 = vmatprep.mubr.f32.mxu0 0.0
        %299 = vmatmul.mubr.f32.gmra.mrb[0].mxu0 %v232
        %v300 = vpop.f32.mrb[0].mxu0
        %v301 = vadd.f32 %v228, %v300
        %v302 = vpop.f32.mrb[0].mxu0
        %303 = vdwg.mxu0
        %v304 = vxor.u32 %v301, 2147483648
        %v305 = vmul.f32 %v304, 1.442695
        %v306 = vpow.pop %v305
        %v307 = vadd.f32 %v306, 1.0
        %v308 = vrcp.pop %v307
        %v309 = vmul.f32 1.0, %v308
        %v310 = vmul.f32 %v301, %v309
        %v311 = vld [vmem:[%s3] sm:$0xff]
        %v312 = vld [vmem:[%s3 + $0x8] sm:$0xff]
        %v313 = vld [vmem:[%s3 + $0x10] sm:$0xff]
        %v314 = vld [vmem:[%s3 + $0x18] sm:$0xff]
        %v315 = vld [vmem:[%s3 + $0x20] sm:$0xff]
        %v316 = vld [vmem:[%s3 + $0x28] sm:$0xff]
        %v317 = vld [vmem:[%s3 + $0x30] sm:$0xff]
        %v318 = vld [vmem:[%s3 + $0x38] sm:$0xff]
        %v319 = vld [vmem:[%s3 + $0x40] sm:$0xff]
        %v320 = vld [vmem:[%s3 + $0x48] sm:$0xff]
        %v321 = vld [vmem:[%s3 + $0x50] sm:$0xff]
        %v322 = vld [vmem:[%s3 + $0x58] sm:$0xff]
        %v323 = vld [vmem:[%s3 + $0x60] sm:$0xff]
        %v324 = vld [vmem:[%s3 + $0x68] sm:$0xff]
        %v325 = vld [vmem:[%s3 + $0x70] sm:$0xff]
        %v326 = vld [vmem:[%s3 + $0x78] sm:$0xff]
        %v327 = vld [vmem:[%s4] sm:$0x1]
        %v329 = vlaneseq
        %v330 = vshrl.u32 %v329, 7
        %v331 = vsub.s32 0, %v330
        %v332 = vrot.slane %v327, %v331
        %334 = vmatprep.subr.mxu0 0.0
        %335 = vmatpush1.msra.mxu0 %v311
        %336 = vmatprep.subr.mxu0 0.0
        %337 = vmatpush1.msra.mxu0 %v312
        %338 = vmatprep.subr.mxu0 0.0
        %339 = vmatpush1.msra.mxu0 %v313
        %340 = vmatprep.subr.mxu0 0.0
        %341 = vmatpush1.msra.mxu0 %v314
        %342 = vmatprep.subr.mxu0 0.0
        %343 = vmatpush1.msra.mxu0 %v315
        %344 = vmatprep.subr.mxu0 0.0
        %345 = vmatpush1.msra.mxu0 %v316
        %346 = vmatprep.subr.mxu0 0.0
        %347 = vmatpush1.msra.mxu0 %v317
        %348 = vmatprep.subr.mxu0 0.0
        %349 = vmatpush1.msra.mxu0 %v318
        %350 = vmatprep.subr.mxu0 0.0
        %351 = vmatpush1.msra.mxu0 %v319
        %352 = vmatprep.subr.mxu0 0.0
        %353 = vmatpush1.msra.mxu0 %v320
        %354 = vmatprep.subr.mxu0 0.0
        %355 = vmatpush1.msra.mxu0 %v321
        %356 = vmatprep.subr.mxu0 0.0
        %357 = vmatpush1.msra.mxu0 %v322
        %358 = vmatprep.subr.mxu0 0.0
        %359 = vmatpush1.msra.mxu0 %v323
        %360 = vmatprep.subr.mxu0 0.0
        %361 = vmatpush1.msra.mxu0 %v324
        %362 = vmatprep.subr.mxu0 0.0
        %363 = vmatpush1.msra.mxu0 %v325
        %364 = vmatprep.subr.mxu0 0.0
        %365 = vmatpush1.msra.mxu0 %v326
        %366 = vmatprep.subr.mxu0 0.0
        %367 = vmatpush1.msra.mxu0 0.0
        %368 = vmatprep.subr.mxu0 0.0
        %369 = vmatpush1.msra.mxu0 0.0
        %370 = vmatprep.subr.mxu0 0.0
        %371 = vmatpush1.msra.mxu0 0.0
        %372 = vmatprep.subr.mxu0 0.0
        %373 = vmatpush1.msra.mxu0 0.0
        %374 = vmatprep.subr.mxu0 0.0
        %375 = vmatpush1.msra.mxu0 0.0
        %376 = vmatprep.subr.mxu0 0.0
        %377 = vmatpush1.msra.mxu0 0.0
        %378 = vmatprep.subr.mxu0 0.0
        %379 = vmatpush1.msra.mxu0 0.0
        %380 = vmatprep.subr.mxu0 0.0
        %381 = vmatpush1.msra.mxu0 0.0
        %382 = vmatprep.subr.mxu0 0.0
        %383 = vmatpush1.msra.mxu0 0.0
        %384 = vmatprep.subr.mxu0 0.0
        %385 = vmatpush1.msra.mxu0 0.0
        %386 = vmatprep.subr.mxu0 0.0
        %387 = vmatpush1.msra.mxu0 0.0
        %388 = vmatprep.subr.mxu0 0.0
        %389 = vmatpush1.msra.mxu0 0.0
        %390 = vmatprep.subr.mxu0 0.0
        %391 = vmatpush1.msra.mxu0 0.0
        %392 = vmatprep.subr.mxu0 0.0
        %393 = vmatpush1.msra.mxu0 0.0
        %394 = vmatprep.subr.mxu0 0.0
        %395 = vmatpush1.msra.mxu0 0.0
        %396 = vmatprep.subr.mxu0 0.0
        %397 = vmatpush1.msra.mxu0 0.0
        %398 = vmatprep.mubr.f32.mxu0 0.0
        %399 = vmatmul.mubr.f32.gmra.mrb[0].mxu0 %v310
        %v400 = vpop.f32.mrb[0].mxu0
        %v401 = vadd.f32 %v332, %v400
        %v402 = vpop.f32.mrb[0].mxu0
        %403 = vdwg.mxu0
        %404 = vst [vmem:[%s215] sm:$0xff] %v401
        %s405 = sand.u32 %s137, 1
        %s406 = scalar_lea.sflag [#allocation3], %s405
        %s407 = sand.u32 %s137, 1
        %s408 = smul.addr %s407, 8
        %s409 = scalar_lea.vmem [#allocation2], %s408
        // Predicated region
        $region41: #{tabular_embedding.1} parent=39 // pred_check
          %p410 = pneg %p147
        $region42: #{tabular_embedding.1} parent=39 // pred_check_branch
          %412 = sbr.rel (%p410) target = $region44
        $region43: #{tabular_embedding.1} parent=39 // pred_region
          %s414 = ssub.s32 128, 128
          %415 = vsyncadd %s406, %s414
          %s416 = smul.addr %s19, 128
          %s417 = scalar_lea.hbm %s5, %s416
          %s419 = sshll.u32 %s409, 4
          %s420 = int_to_ptr.vmem [resolvable:$true] %s419
          %422 = dma.vmem_to_hbm [thread:$0]  %s420, 128, %s417, %s406
        $region44: #{tabular_embedding.1} parent=39 // pred_fallthru
          _
      $region40: #{tabular_embedding.1} parent=5 // pred_fallthru
        _
      %p423 = scmp.le.s32.totalorder 2, %s14
      // Predicated region
      $region45: #{tabular_embedding.1} parent=5 // pred_check
        %p424 = pneg %p423
      $region46: #{tabular_embedding.1} parent=5 // pred_check_branch
        %426 = sbr.rel (%p424) target = $region48
      $region47: #{tabular_embedding.1} parent=5 // pred_region
        %s427 = ssub.s32 %s14, 2
        // Predicated region
        $region49: #{tabular_embedding.1} parent=47 // pred_check
          %p428 = pneg %p153
        $region50: #{tabular_embedding.1} parent=47 // pred_check_branch
          %430 = sbr.rel (%p428) target = $region52
        $region51: #{tabular_embedding.1} parent=47 // pred_region
          %s431 = sand.u32 %s138, 1
          %s432 = scalar_lea.sflag [#allocation3], %s431
          %s433 = sand.u32 %s138, 1
          %s434 = smul.addr %s433, 8
          %s435 = scalar_lea.vmem [#allocation2], %s434
          %436 = dma.done %s432, 128
        $region52: #{tabular_embedding.1} parent=47 // pred_fallthru
          _
      $region48: #{tabular_embedding.1} parent=5 // pred_fallthru
        _
    $region6: #{tabular_embedding.1} parent=1 // loop_footer
      %s18 = sadd.s32 1, %s14
    $region7: #{tabular_embedding.1} parent=1 // loop_footer_branch
      %13 = sbr.rel target = $region3
    $region8: #{tabular_embedding.1} parent=1 // loop_exit
      _
    %437 = vsyncpa [#allocation3], 1
    %s438 = scalar_lea.sflag [#allocation3], 1
    %439 = vsyncpa %s438, 1

</llo_original>
